<compile_context>
chip_gen: v5e
topology: v5e:2x2
jax: 0.10.0
libtpu: 0.0.40
codegen_flags: <defaults>
</compile_context>

<pallas_src>
import functools

import jax
import jax.numpy as jnp
from jax.experimental import pallas as pl
from jax.experimental.pallas import tpu as pltpu

INPUT_SIZE = 20
HIDDEN_SIZE = 64


def _round_up(x, m):
    return ((x + m - 1) // m) * m


def mlp_kernel(x_ref, w1t_ref, b1_ref, w2t_ref, b2_ref, o_ref):
    """One batch tile.

    x_ref  : (TB, 20) f32  input rows (pipelined; last block may be partial)
    w1t_ref: (64, 20) f32  W1^T, VMEM-resident across grid steps
    b1_ref : (64, 1)  f32  resident
    w2t_ref: (1, 64)  f32  resident
    b2_ref : (1, 1)   f32  SMEM scalar
    o_ref  : (1, TB)  f32  lane-dense output (batch on the lane axis)
    """
    # Layer 1 on the MXU: hT = W1^T @ x^T, contracting the minor axis of both
    # operands so the batch tile ends up on the 128-lane axis of the result.
    ht = jax.lax.dot_general(
        w1t_ref[...], x_ref[...],
        dimension_numbers=(((1,), (1,)), ((), ())),
        preferred_element_type=jnp.float32)                    # (64, TB)
    ht = jnp.maximum(ht + b1_ref[...], 0.0)                    # bias + ReLU (VPU)
    # Layer 2 on the MXU as well: (1, 64) @ (64, TB) -> (1, TB), MXU-native.
    yt = jax.lax.dot_general(
        w2t_ref[...], ht,
        dimension_numbers=(((1,), (0,)), ((), ())),
        preferred_element_type=jnp.float32)                    # (1, TB)
    o_ref[...] = (yt + b2_ref[0, 0]).astype(o_ref.dtype)


@functools.partial(jax.jit, static_argnames=("block_batch",))
def nn_validator_forward(x, w1, b1, w2, b2, *, block_batch=4096):
    """x: (B, INPUT_SIZE) f32 -> (B, 1) f32."""
    B = x.shape[0]
    block_batch = max(128, _round_up(block_batch, 128))

    if B >= 128:
        # Aim for >= 2 grid steps (v7x megacore), capped at block_batch.
        tb = min(block_batch, max(128, _round_up((B + 1) // 2, 128)))
        x_in = x.astype(jnp.float32)            # read directly; never copied
    else:
        # Tiny batch: pad rows up to a sublane multiple so the single block
        # exactly matches the array (negligible cost at this size).
        tb = _round_up(max(B, 1), 8)
        x_in = x.astype(jnp.float32)
        if tb != B:
            x_in = jnp.pad(x_in, ((0, tb - B), (0, 0)))

    num_steps = -(-B // tb)
    b_alloc = num_steps * tb                    # output slab only (<= B + tb-1)

    # One-time tiny weight prep (64x20 etc.), resident across all grid steps.
    w1t = jnp.transpose(w1).astype(jnp.float32)                  # (64, 20)
    b1_col = jnp.reshape(b1, (HIDDEN_SIZE, 1)).astype(jnp.float32)
    w2t_row = jnp.reshape(w2, (1, HIDDEN_SIZE)).astype(jnp.float32)
    b2_s = jnp.reshape(b2, (1, 1)).astype(jnp.float32)

    cost = pl.CostEstimate(
        flops=2 * b_alloc * HIDDEN_SIZE * (INPUT_SIZE + 1),
        transcendentals=0,
        bytes_accessed=4 * (b_alloc * (INPUT_SIZE + 1)
                            + HIDDEN_SIZE * (INPUT_SIZE + 2) + 1),
    )

    out_t = pl.pallas_call(
        mlp_kernel,
        out_shape=jax.ShapeDtypeStruct((1, b_alloc), jnp.float32),
        grid=(num_steps,),
        in_specs=[
            pl.BlockSpec((tb, INPUT_SIZE), lambda i: (i, 0)),           # x (pipelined)
            pl.BlockSpec((HIDDEN_SIZE, INPUT_SIZE), lambda i: (0, 0)),  # W1^T (resident)
            pl.BlockSpec((HIDDEN_SIZE, 1), lambda i: (0, 0)),           # b1   (resident)
            pl.BlockSpec((1, HIDDEN_SIZE), lambda i: (0, 0)),           # W2^T (resident)
            pl.BlockSpec(memory_space=pltpu.MemorySpace.SMEM),          # b2 scalar
        ],
        out_specs=pl.BlockSpec((1, tb), lambda i: (0, i)),
        compiler_params=pltpu.CompilerParams(
            dimension_semantics=("parallel",)),                         # megacore (v7x)
        cost_estimate=cost,
    )(x_in, w1t, b1_col, w2t_row, b2_s)

    # (1, b_alloc) lane-dense slab -> (B, 1) to match nn.Linear output.
    return out_t[0, :B].reshape(B, 1)


def init_params(key):
    """Deterministic init mimicking nn.Linear's uniform(-1/sqrt(fan_in), ...)."""
    k1, k2, k3, k4 = jax.random.split(key, 4)
    bound1 = 1.0 / jnp.sqrt(INPUT_SIZE)
    bound2 = 1.0 / jnp.sqrt(HIDDEN_SIZE)
    w1 = jax.random.uniform(k1, (INPUT_SIZE, HIDDEN_SIZE), jnp.float32,
                            -bound1, bound1)
    b1 = jax.random.uniform(k2, (1, HIDDEN_SIZE), jnp.float32, -bound1, bound1)
    w2 = jax.random.uniform(k3, (HIDDEN_SIZE, 1), jnp.float32, -bound2, bound2)
    b2 = jax.random.uniform(k4, (1, 1), jnp.float32, -bound2, bound2)
    return w1, b1, w2, b2


if __name__ == "__main__":
    key = jax.random.PRNGKey(0)
    kx, kp = jax.random.split(key)

    batch = 8
    x = jax.random.normal(kx, (batch, INPUT_SIZE), jnp.float32)
    w1, b1, w2, b2 = init_params(kp)

    out = nn_validator_forward(x, w1, b1, w2, b2)
    out = jax.block_until_ready(out)

    # Reference check in plain JAX (same math as the PyTorch module).
    ref = jnp.maximum(x @ w1 + b1, 0.0) @ w2 + b2
    assert out.shape == (batch, 1)
    assert jnp.allclose(out, ref, atol=1e-4, rtol=1e-4), (
        float(jnp.max(jnp.abs(out - ref))))

    print("KERNEL_OK")
</pallas_src>

<mosaic_0001>
module attributes {stable_mosaic.version = 11 : i64} {
  func.func @mlp_kernel(%arg0: i32, %arg1: memref<8x20xf32, #tpu.memory_space<vmem>>, %arg2: memref<64x20xf32, #tpu.memory_space<vmem>>, %arg3: memref<64x1xf32, #tpu.memory_space<vmem>>, %arg4: memref<1x64xf32, #tpu.memory_space<vmem>>, %arg5: memref<1x1xf32, #tpu.memory_space<smem>>, %arg6: memref<1x8xf32, #tpu.memory_space<vmem>>) attributes {dimension_semantics = [#tpu.dimension_semantics<parallel>], iteration_bounds = array<i64: 1>, scalar_prefetch = 0 : i64, scratch_operands = 0 : i64, tpu.core_type = #tpu.core_type<tc>, window_params = [{transform_indices = @transform_0, window_bounds = array<i64: 8, 20>}, {pipeline_mode = #tpu.pipeline_mode<synchronous>, transform_indices = @transform_1, window_bounds = array<i64: 64, 20>}, {pipeline_mode = #tpu.pipeline_mode<synchronous>, transform_indices = @transform_2, window_bounds = array<i64: 64, 1>}, {pipeline_mode = #tpu.pipeline_mode<synchronous>, transform_indices = @transform_3, window_bounds = array<i64: 1, 64>}, {transform_indices = @transform_4, window_bounds = array<i64: 1, 1>}, {transform_indices = @transform_5, window_bounds = array<i64: 1, 8>}]} {
    %c0 = arith.constant 0 : index
    %c0_0 = arith.constant 0 : index
    %0 = vector.load %arg2[%c0, %c0_0] : memref<64x20xf32, #tpu.memory_space<vmem>>, vector<64x20xf32>
    %c0_1 = arith.constant 0 : index
    %c0_2 = arith.constant 0 : index
    %1 = vector.load %arg1[%c0_1, %c0_2] : memref<8x20xf32, #tpu.memory_space<vmem>>, vector<8x20xf32>
    %cst = arith.constant dense<0.000000e+00> : vector<64x8xf32>
    %2 = tpu.matmul %0, %1, %cst {dimension_numbers = #tpu.dot_dimension_numbers<[1], [1], [0], [0], [0, 0, 1, 0], [], []>} : vector<64x20xf32>, vector<8x20xf32>, vector<64x8xf32> -> vector<64x8xf32>
    %c0_3 = arith.constant 0 : index
    %c0_4 = arith.constant 0 : index
    %3 = vector.load %arg3[%c0_3, %c0_4] : memref<64x1xf32, #tpu.memory_space<vmem>>, vector<64x1xf32>
    %4 = vector.broadcast %3 : vector<64x1xf32> to vector<64x8xf32>
    %5 = arith.addf %2, %4 : vector<64x8xf32>
    %cst_5 = arith.constant 0.000000e+00 : f32
    %6 = vector.broadcast %cst_5 : f32 to vector<64x8xf32>
    %7 = arith.maximumf %5, %6 : vector<64x8xf32>
    %c0_6 = arith.constant 0 : index
    %c0_7 = arith.constant 0 : index
    %8 = vector.load %arg4[%c0_6, %c0_7] : memref<1x64xf32, #tpu.memory_space<vmem>>, vector<1x64xf32>
    %cst_8 = arith.constant dense<0.000000e+00> : vector<1x8xf32>
    %9 = tpu.matmul %8, %7, %cst_8 {dimension_numbers = #tpu.dot_dimension_numbers<[1], [0], [0], [1], [0, 0, 1, 1], [], []>} : vector<1x64xf32>, vector<64x8xf32>, vector<1x8xf32> -> vector<1x8xf32>
    %c0_9 = arith.constant 0 : index
    %c0_10 = arith.constant 0 : index
    %10 = memref.load %arg5[%c0_9, %c0_10] : memref<1x1xf32, #tpu.memory_space<smem>>
    %11 = vector.broadcast %10 : f32 to vector<1x8xf32>
    %12 = arith.addf %9, %11 : vector<1x8xf32>
    %c0_11 = arith.constant 0 : index
    %c0_12 = arith.constant 0 : index
    %13 = vector.load %arg6[%c0_11, %c0_12] : memref<1x8xf32, #tpu.memory_space<vmem>>, vector<1x8xf32>
    tpu.vector_store %arg6[%c0_11, %c0_12], %12 {strides = array<i32>} : memref<1x8xf32, #tpu.memory_space<vmem>>, vector<1x8xf32>,
    return
  }
  func.func @transform_0(%arg0: i32) -> (i32, i32) {
    %c0_i32 = arith.constant 0 : i32
    %c0_i32_0 = arith.constant 0 : i32
    return %arg0, %c0_i32 : i32, i32
  }
  func.func @transform_1(%arg0: i32) -> (i32, i32) {
    %c0_i32 = arith.constant 0 : i32
    %c0_i32_0 = arith.constant 0 : i32
    %c0_i32_1 = arith.constant 0 : i32
    return %c0_i32, %c0_i32_0 : i32, i32
  }
  func.func @transform_2(%arg0: i32) -> (i32, i32) {
    %c0_i32 = arith.constant 0 : i32
    %c0_i32_0 = arith.constant 0 : i32
    %c0_i32_1 = arith.constant 0 : i32
    return %c0_i32, %c0_i32_0 : i32, i32
  }
  func.func @transform_3(%arg0: i32) -> (i32, i32) {
    %c0_i32 = arith.constant 0 : i32
    %c0_i32_0 = arith.constant 0 : i32
    %c0_i32_1 = arith.constant 0 : i32
    return %c0_i32, %c0_i32_0 : i32, i32
  }
  func.func @transform_4(%arg0: i32) -> (i32, i32) {
    %c0_i32 = arith.constant 0 : i32
    %c0_i32_0 = arith.constant 0 : i32
    %c0_i32_1 = arith.constant 0 : i32
    return %c0_i32, %c0_i32_0 : i32, i32
  }
  func.func @transform_5(%arg0: i32) -> (i32, i32) {
    %c0_i32 = arith.constant 0 : i32
    %c0_i32_0 = arith.constant 0 : i32
    return %c0_i32, %arg0 : i32, i32
  }
}

</mosaic_0001>

<llo_original>
// kernel: nn_validator_forward.1
$region0: #{nn_validator_forward.1}
  #allocation0 [shape = 'u32[]', space=smem, size = 0x4, offset = 0x4, fixed_abs, tag = 'smem constant byte address 0x4 - core index']
  #allocation1 [shape = 'u32[72,128]{1,0:T(1,128)}', space=vmem, size = 0x9000, scoped, tag = 'internal scratch']
  #allocation2 [shape = 'f32[1,1]{1,0:T(1,128)S(6)}', space=smem, size = 0x200, scoped, tag = 'scoped memory for nn_validator_forward.1']
  %s0 = inlined_call_operand.vmem [shape: f32[8,20], index: 0, kind: input, shape index: {}]
  %s1 = inlined_call_operand.vmem [shape: f32[64,20], index: 1, kind: input, shape index: {}]
  %s2 = inlined_call_operand.vmem [shape: f32[64,1], index: 2, kind: input, shape index: {}]
  %s3 = inlined_call_operand.vmem [shape: f32[1,64], index: 3, kind: input, shape index: {}]
  %s4 = inlined_call_operand.<no memory space> [shape: f32[1,1], index: 4, kind: input, shape index: {}]
  %s5 = inlined_call_operand.hbm [shape: f32[1,8], index: 5, kind: output, shape index: {}]
  %s6 = sld [smem:[#allocation0]]
  $region30: #{nn_validator_forward.1} parent=0
    _
  %s8 = ssub.s32 1, %s6
  %s9 = scalar_select 0, %s8, %s6
  %10 = sst [smem:[#allocation2]] %s4
  $region1: #{nn_validator_forward.1} parent=0
    #allocation3 [shape = 'u8[512]{0}', space=vmem, size = 0x400, scoped, tag = 'output window, operand 0, single buffered']
    #allocation4 [shape = 's32[1]{0}', space=sflag, size = 0x4, scoped, tag = 'scoped memory for nn_validator_forward.1']
    %11 = vsyncpa [#allocation4], 0
    // Predicated region
    $region2: #{nn_validator_forward.1} parent=1 // pred_check
      _
    $region3: #{nn_validator_forward.1} parent=1 // pred_check_branch
      %13 = sbr.rel (0) target = $region5
    $region4: #{nn_validator_forward.1} parent=1 // pred_region
      _
    $region5: #{nn_validator_forward.1} parent=1 // pred_fallthru
      _
    // Predicated region
    $region6: #{nn_validator_forward.1} parent=1 // pred_check
      _
    $region7: #{nn_validator_forward.1} parent=1 // pred_check_branch
      %15 = sbr.rel (0) target = $region9
    $region8: #{nn_validator_forward.1} parent=1 // pred_region
      _
    $region9: #{nn_validator_forward.1} parent=1 // pred_fallthru
      _
    // Predicated region
    $region10: #{nn_validator_forward.1} parent=1 // pred_check
      _
    $region11: #{nn_validator_forward.1} parent=1 // pred_check_branch
      %17 = sbr.rel (0) target = $region13
    $region12: #{nn_validator_forward.1} parent=1 // pred_region
      _
    $region13: #{nn_validator_forward.1} parent=1 // pred_fallthru
      _
    // Predicated region
    $region14: #{nn_validator_forward.1} parent=1 // pred_check
      _
    $region15: #{nn_validator_forward.1} parent=1 // pred_check_branch
      %19 = sbr.rel (0) target = $region17
    $region16: #{nn_validator_forward.1} parent=1 // pred_region
      _
    $region17: #{nn_validator_forward.1} parent=1 // pred_fallthru
      _
    // Predicated region
    $region18: #{nn_validator_forward.1} parent=1 // pred_check
      _
    $region19: #{nn_validator_forward.1} parent=1 // pred_check_branch
      %21 = sbr.rel (0) target = $region21
    $region20: #{nn_validator_forward.1} parent=1 // pred_region
      _
    $region21: #{nn_validator_forward.1} parent=1 // pred_fallthru
      _
    %v22 = vld [vmem:[%s1] sm:$0xff]
    %v23 = vld [vmem:[%s1 + $0x8] sm:$0xff]
    %v24 = vld [vmem:[%s1 + $0x10] sm:$0xff]
    %v25 = vld [vmem:[%s1 + $0x18] sm:$0xff]
    %v26 = vld [vmem:[%s1 + $0x20] sm:$0xff]
    %v27 = vld [vmem:[%s1 + $0x28] sm:$0xff]
    %v28 = vld [vmem:[%s1 + $0x30] sm:$0xff]
    %v29 = vld [vmem:[%s1 + $0x38] sm:$0xff]
    %v30 = vld [vmem:[%s0] sm:$0xff]
    %v31 = vld [vmem:[%s2] sm:$0xff]
    %v32 = vld [vmem:[%s2 + $0x8] sm:$0xff]
    %v33 = vld [vmem:[%s2 + $0x10] sm:$0xff]
    %v34 = vld [vmem:[%s2 + $0x18] sm:$0xff]
    %v35 = vld [vmem:[%s2 + $0x20] sm:$0xff]
    %v36 = vld [vmem:[%s2 + $0x28] sm:$0xff]
    %v37 = vld [vmem:[%s2 + $0x30] sm:$0xff]
    %v38 = vld [vmem:[%s2 + $0x38] sm:$0xff]
    %40 = vset.pattern.permute.xlu0 0
    %41 = vperm.xlu0 %40, %v31
    %v42 = vpop.permute.xlu0 %41
    %45 = vset.pattern.permute.xlu0 0
    %46 = vperm.xlu0 %45, %v32
    %v47 = vpop.permute.xlu0 %46
    %50 = vset.pattern.permute.xlu0 0
    %51 = vperm.xlu0 %50, %v33
    %v52 = vpop.permute.xlu0 %51
    %55 = vset.pattern.permute.xlu0 0
    %56 = vperm.xlu0 %55, %v34
    %v57 = vpop.permute.xlu0 %56
    %60 = vset.pattern.permute.xlu0 0
    %61 = vperm.xlu0 %60, %v35
    %v62 = vpop.permute.xlu0 %61
    %65 = vset.pattern.permute.xlu0 0
    %66 = vperm.xlu0 %65, %v36
    %v67 = vpop.permute.xlu0 %66
    %70 = vset.pattern.permute.xlu0 0
    %71 = vperm.xlu0 %70, %v37
    %v72 = vpop.permute.xlu0 %71
    %75 = vset.pattern.permute.xlu0 0
    %76 = vperm.xlu0 %75, %v38
    %v77 = vpop.permute.xlu0 %76
    %vm79 = vcmask 162816
    %v81 = vsel %vm79, %v22, 0
    %v84 = vsel %vm79, %v23, 0
    %v87 = vsel %vm79, %v24, 0
    %v90 = vsel %vm79, %v25, 0
    %v93 = vsel %vm79, %v26, 0
    %v96 = vsel %vm79, %v27, 0
    %v99 = vsel %vm79, %v28, 0
    %v102 = vsel %vm79, %v29, 0
    %v105 = vsel %vm79, %v30, 0
    %107 = vmatpush.xpose.msra.mxu0 0.0
    %108 = vmatpush.xpose.msra.mxu0 0.0
    %109 = vmatpush.xpose.msra.mxu0 0.0
    %110 = vmatpush.xpose.msra.mxu0 0.0
    %111 = vmatpush.xpose.msra.mxu0 0.0
    %112 = vmatpush.xpose.msra.mxu0 0.0
    %113 = vmatpush.xpose.msra.mxu0 0.0
    %114 = vmatpush.xpose.msra.mxu0 0.0
    %115 = vmatpush.xpose.msra.mxu0 0.0
    %116 = vmatpush.xpose.msra.mxu0 0.0
    %117 = vmatpush.xpose.msra.mxu0 0.0
    %118 = vmatpush.xpose.msra.mxu0 0.0
    %119 = vmatpush.xpose.msra.mxu0 0.0
    %120 = vmatpush.xpose.msra.mxu0 0.0
    %121 = vmatpush.xpose.msra.mxu0 0.0
    %122 = vmatpush.xpose.msra.mxu0 %v105
    %123 = vmatmul.f32.gmra.mxu0 %v81
    %v124 = vpop.f32.mrf.mxu0
    %v125 = vadd.f32 %v42, %v124
    %126 = vmatmul.f32.gmra.mxu0 %v84
    %v127 = vpop.f32.mrf.mxu0
    %v128 = vadd.f32 %v47, %v127
    %129 = vmatmul.f32.gmra.mxu0 %v87
    %v130 = vpop.f32.mrf.mxu0
    %v131 = vadd.f32 %v52, %v130
    %132 = vmatmul.f32.gmra.mxu0 %v90
    %v133 = vpop.f32.mrf.mxu0
    %v134 = vadd.f32 %v57, %v133
    %135 = vmatmul.f32.gmra.mxu0 %v93
    %v136 = vpop.f32.mrf.mxu0
    %v137 = vadd.f32 %v62, %v136
    %138 = vmatmul.f32.gmra.mxu0 %v96
    %v139 = vpop.f32.mrf.mxu0
    %v140 = vadd.f32 %v67, %v139
    %141 = vmatmul.f32.gmra.mxu0 %v99
    %v142 = vpop.f32.mrf.mxu0
    %v143 = vadd.f32 %v72, %v142
    %144 = vmatmul.f32.gmra.mxu0 %v102
    %v145 = vpop.f32.mrf.mxu0
    %v146 = vadd.f32 %v77, %v145
    %147 = vdwg.mxu0
    %v148 = vmax.f32 %v125, 0.0
    %v149 = vmax.f32 %v128, 0.0
    %v150 = vmax.f32 %v131, 0.0
    %v151 = vmax.f32 %v134, 0.0
    %v152 = vmax.f32 %v137, 0.0
    %v153 = vmax.f32 %v140, 0.0
    %v154 = vmax.f32 %v143, 0.0
    %v155 = vmax.f32 %v146, 0.0
    %v156 = vld [vmem:[%s3] sm:$0x1]
    %s157 = sld [smem:[#allocation2]]
    %v158 = vstv %s157
    %vm159 = vcmask 523264
    %v161 = vsel %vm159, %v156, 0
    %163 = vmatpush.msra.mxu0 0.0
    %164 = vmatpush.msra.mxu0 0.0
    %165 = vmatpush.msra.mxu0 0.0
    %166 = vmatpush.msra.mxu0 0.0
    %167 = vmatpush.msra.mxu0 0.0
    %168 = vmatpush.msra.mxu0 0.0
    %169 = vmatpush.msra.mxu0 0.0
    %170 = vmatpush.msra.mxu0 0.0
    %171 = vmatpush.msra.mxu0 %v155
    %172 = vmatpush.msra.mxu0 %v154
    %173 = vmatpush.msra.mxu0 %v153
    %174 = vmatpush.msra.mxu0 %v152
    %175 = vmatpush.msra.mxu0 %v151
    %176 = vmatpush.msra.mxu0 %v150
    %177 = vmatpush.msra.mxu0 %v149
    %178 = vmatpush.msra.mxu0 %v148
    %179 = vmatmul.f32.gmra.mxu0 %v161
    %v180 = vpop.f32.mrf.mxu0
    %v181 = vadd.f32 %v158, %v180
    %182 = vdwg.mxu0
    %vm183 = vcmask 57344
    %184 = vst.msk [vmem:[#allocation3] sm:$0x1] %vm183, %v181
    // Predicated region
    $region22: #{nn_validator_forward.1} parent=1 // pred_check
      _
    $region23: #{nn_validator_forward.1} parent=1 // pred_check_branch
      %186 = sbr.rel (0) target = $region25
    $region24: #{nn_validator_forward.1} parent=1 // pred_region
      %188 = vsyncadd [#allocation4], 0
      %s190 = sshll.u32 [#allocation3], 4
      %s191 = int_to_ptr.vmem [resolvable:$true] %s190
      %s192 = sshll.u32 %s5, 4
      %s193 = int_to_ptr.hbm [resolvable:$true] %s192
      %195 = dma.vmem_to_hbm [thread:$0]  %s191, 16, %s193, [#allocation4]
    $region25: #{nn_validator_forward.1} parent=1 // pred_fallthru
      _
    // Predicated region
    $region26: #{nn_validator_forward.1} parent=1 // pred_check
      _
    $region27: #{nn_validator_forward.1} parent=1 // pred_check_branch
      %197 = sbr.rel (0) target = $region29
    $region28: #{nn_validator_forward.1} parent=1 // pred_region
      %199 = dma.done [#allocation4], 16
    $region29: #{nn_validator_forward.1} parent=1 // pred_fallthru
      _
    %200 = vsyncpa [#allocation4], 1

</llo_original>
